<compile_context>
chip_gen: v7x
topology: tpu7x:2x2x1
jax: 0.10.0
libtpu: 0.0.40
codegen_flags: <defaults>
</compile_context>

<pallas_src>
import jax
import jax.numpy as jnp
from jax.experimental import pallas as pl
from jax.experimental.pallas import tpu as pltpu

# Feature dims of the FC module: 12 -> 144 -> 256 -> 12
D_IN, D_H1, D_H2, D_OUT = 12, 144, 256, 12


def fc_kernel(qt_ref, w1_ref, b1_ref, w2_ref, b2_ref, w3_ref, b3_ref, o_ref):
    # q^T tile: (D_IN, TILE_B) f32 -> cast to bf16 in-kernel (VPU, hidden under
    # DMA/MXU slack).  Weights are bf16, biases f32, accumulation f32.
    x = qt_ref[...].astype(jnp.bfloat16)

    # Layer 1: (144,12) @ (12,TB) -> (144,TB), bias add + ReLU, back to bf16.
    h1 = jnp.dot(w1_ref[...], x, preferred_element_type=jnp.float32)
    h1 = jnp.maximum(h1 + b1_ref[...], 0.0).astype(jnp.bfloat16)

    # Layer 2: (256,144) @ (144,TB) -> (256,TB).
    h2 = jnp.dot(w2_ref[...], h1, preferred_element_type=jnp.float32)
    h2 = jnp.maximum(h2 + b2_ref[...], 0.0).astype(jnp.bfloat16)

    # Layer 3: (12,256) @ (256,TB) -> (12,TB).
    logits = jnp.dot(w3_ref[...], h2, preferred_element_type=jnp.float32)
    logits = logits + b3_ref[...]

    # Softmax over the feature axis (sublanes / axis 0); exact normalization so
    # rows sum to 1 to f32 precision.
    m = jnp.max(logits, axis=0, keepdims=True)
    e = jnp.exp(logits - m)
    denom = jnp.sum(e, axis=0, keepdims=True)
    o_ref[...] = (e / denom).astype(o_ref.dtype)


def _num_tensorcores():
    # v7x has 2 TensorCores per chip; v5e/v6e have 1.  Best-effort query so the
    # script also runs under interpret mode / non-TPU backends.
    try:
        kind = jax.devices()[0].device_kind.lower()
    except Exception:
        return 1
    return 2 if any(tag in kind for tag in ("v7", "7x")) else 1


def _pick_tile_b(B):
    if B <= 128:
        return B  # single full-extent block (full-dim lane axis is legal)
    cores = _num_tensorcores()
    # One batch tile per TensorCore (grid=1 on v5e/v6e, grid=2 on v7x); lane
    # axis must be a multiple of 128.  Cap to keep f32 intermediates modest.
    tile = pl.cdiv(pl.cdiv(B, cores), 128) * 128
    return min(tile, 4096)


def fc_forward(q, w1, b1, w2, b2, w3, b3, *, tile_b=None):
    """q: (B, 12) f32.  Weights in PyTorch (out, in) layout (ideally already
    bf16), biases shaped (out, 1) f32.  Returns softmax probabilities (B, 12)."""
    B = q.shape[0]
    if tile_b is None:
        tile_b = _pick_tile_b(B)
    grid = (pl.cdiv(B, tile_b),)

    # Batch-on-lanes layout: kernel tiles are lane-dense (feat, tile_b).
    qt = q.T  # (D_IN, B), stays f32; cast happens inside the kernel.

    # No-ops when the caller already stores weights in bf16 (recommended).
    w1 = w1.astype(jnp.bfloat16)
    w2 = w2.astype(jnp.bfloat16)
    w3 = w3.astype(jnp.bfloat16)

    def resident(shape):
        # Full-array block, constant index_map -> VMEM-resident across steps.
        return pl.BlockSpec(shape, lambda i: (0, 0))

    # Note: when tile_b does not divide B the last block over-covers the batch;
    # batch columns are independent and OOB output lanes are masked, so this is
    # safe (no jnp.pad copy needed).
    out_t = pl.pallas_call(
        fc_kernel,
        out_shape=jax.ShapeDtypeStruct((D_OUT, B), jnp.float32),
        grid=grid,
        in_specs=[
            pl.BlockSpec((D_IN, tile_b), lambda i: (0, i)),   # q^T tile (f32)
            resident((D_H1, D_IN)),  resident((D_H1, 1)),     # w1, b1
            resident((D_H2, D_H1)),  resident((D_H2, 1)),     # w2, b2
            resident((D_OUT, D_H2)), resident((D_OUT, 1)),    # w3, b3
        ],
        out_specs=pl.BlockSpec((D_OUT, tile_b), lambda i: (0, i)),
        compiler_params=pltpu.CompilerParams(
            dimension_semantics=("parallel",)),
    )(qt, w1, b1, w2, b2, w3, b3)

    return out_t.T  # (B, D_OUT)


def init_params(key):
    """Deterministic parameter init matching the PyTorch module's shapes.

    nn.Linear(in, out): weight (out, in), bias (out,).  Weights are kept in the
    native (out, in) layout (kernel computes W @ x^T); biases are stored as
    (out, 1) so they broadcast over the batch (lane) axis.
    """
    dims = [(D_IN, D_H1), (D_H1, D_H2), (D_H2, D_OUT)]
    params = []
    for fan_in, fan_out in dims:
        key, kw, kb = jax.random.split(key, 3)
        bound = 1.0 / jnp.sqrt(fan_in)  # PyTorch default uniform init bound
        w = jax.random.uniform(kw, (fan_out, fan_in), jnp.float32, -bound, bound)
        b = jax.random.uniform(kb, (fan_out, 1), jnp.float32, -bound, bound)
        params.extend([w, b])
    return tuple(params)


if __name__ == "__main__":
    key = jax.random.PRNGKey(0)
    key, kq = jax.random.split(key)

    B = 256  # small batch; multiple of 128 so batch-on-lanes tiles are unmasked
    q = jax.random.normal(kq, (B, D_IN), jnp.float32)

    w1, b1, w2, b2, w3, b3 = init_params(key)
    # Store matmul weights in bf16 once (hoisted out of the per-call path).
    w1b, w2b, w3b = (w.astype(jnp.bfloat16) for w in (w1, w2, w3))

    out = jax.block_until_ready(fc_forward(q, w1b, b1, w2b, b2, w3b, b3))

    # Reference emulating the kernel's bf16 matmul inputs / f32 accumulation.
    bf = jnp.bfloat16
    h1 = jnp.maximum(
        jnp.dot(q.astype(bf), w1b.T, preferred_element_type=jnp.float32) + b1.T,
        0.0)
    h2 = jnp.maximum(
        jnp.dot(h1.astype(bf), w2b.T, preferred_element_type=jnp.float32) + b2.T,
        0.0)
    logits = (jnp.dot(h2.astype(bf), w3b.T, preferred_element_type=jnp.float32)
              + b3.T)
    ref = jax.nn.softmax(logits, axis=1)

    assert out.shape == (B, D_OUT)
    assert jnp.allclose(out, ref, atol=2e-3, rtol=0)
    # Exact divide in the kernel -> rows sum to 1 to f32 precision.
    assert jnp.allclose(jnp.sum(out, axis=1), 1.0, atol=1e-3)

    print("KERNEL_OK")
</pallas_src>

<mosaic_0001>
module attributes {stable_mosaic.version = 11 : i64} {
  func.func @fc_kernel(%arg0: i32, %arg1: memref<12x256xf32, #tpu.memory_space<vmem>>, %arg2: memref<144x12xbf16, #tpu.memory_space<vmem>>, %arg3: memref<144x1xf32, #tpu.memory_space<vmem>>, %arg4: memref<256x144xbf16, #tpu.memory_space<vmem>>, %arg5: memref<256x1xf32, #tpu.memory_space<vmem>>, %arg6: memref<12x256xbf16, #tpu.memory_space<vmem>>, %arg7: memref<12x1xf32, #tpu.memory_space<vmem>>, %arg8: memref<12x256xf32, #tpu.memory_space<vmem>>) attributes {dimension_semantics = [#tpu.dimension_semantics<parallel>], iteration_bounds = array<i64: 1>, scalar_prefetch = 0 : i64, scratch_operands = 0 : i64, tpu.core_type = #tpu.core_type<tc>, window_params = [{transform_indices = @transform_0, window_bounds = array<i64: 12, 256>}, {pipeline_mode = #tpu.pipeline_mode<synchronous>, transform_indices = @transform_1, window_bounds = array<i64: 144, 12>}, {pipeline_mode = #tpu.pipeline_mode<synchronous>, transform_indices = @transform_2, window_bounds = array<i64: 144, 1>}, {pipeline_mode = #tpu.pipeline_mode<synchronous>, transform_indices = @transform_3, window_bounds = array<i64: 256, 144>}, {pipeline_mode = #tpu.pipeline_mode<synchronous>, transform_indices = @transform_4, window_bounds = array<i64: 256, 1>}, {pipeline_mode = #tpu.pipeline_mode<synchronous>, transform_indices = @transform_5, window_bounds = array<i64: 12, 256>}, {pipeline_mode = #tpu.pipeline_mode<synchronous>, transform_indices = @transform_6, window_bounds = array<i64: 12, 1>}, {transform_indices = @transform_7, window_bounds = array<i64: 12, 256>}]} {
    %c0 = arith.constant 0 : index
    %c0_0 = arith.constant 0 : index
    %0 = vector.load %arg1[%c0, %c0_0] : memref<12x256xf32, #tpu.memory_space<vmem>>, vector<12x256xf32>
    %1 = arith.truncf %0 : vector<12x256xf32> to vector<12x256xbf16>
    %c0_1 = arith.constant 0 : index
    %c0_2 = arith.constant 0 : index
    %2 = vector.load %arg2[%c0_1, %c0_2] : memref<144x12xbf16, #tpu.memory_space<vmem>>, vector<144x12xbf16>
    %cst = arith.constant dense<0.000000e+00> : vector<144x256xf32>
    %3 = tpu.matmul %2, %1, %cst {dimension_numbers = #tpu.dot_dimension_numbers<[1], [0], [0], [1], [0, 0, 1, 1], [], []>} : vector<144x12xbf16>, vector<12x256xbf16>, vector<144x256xf32> -> vector<144x256xf32>
    %c0_3 = arith.constant 0 : index
    %c0_4 = arith.constant 0 : index
    %4 = vector.load %arg3[%c0_3, %c0_4] : memref<144x1xf32, #tpu.memory_space<vmem>>, vector<144x1xf32>
    %5 = vector.broadcast %4 : vector<144x1xf32> to vector<144x256xf32>
    %6 = arith.addf %3, %5 : vector<144x256xf32>
    %cst_5 = arith.constant 0.000000e+00 : f32
    %7 = vector.broadcast %cst_5 : f32 to vector<144x256xf32>
    %8 = arith.maximumf %6, %7 : vector<144x256xf32>
    %9 = arith.truncf %8 : vector<144x256xf32> to vector<144x256xbf16>
    %c0_6 = arith.constant 0 : index
    %c0_7 = arith.constant 0 : index
    %10 = vector.load %arg4[%c0_6, %c0_7] : memref<256x144xbf16, #tpu.memory_space<vmem>>, vector<256x144xbf16>
    %cst_8 = arith.constant dense<0.000000e+00> : vector<256x256xf32>
    %11 = tpu.matmul %10, %9, %cst_8 {dimension_numbers = #tpu.dot_dimension_numbers<[1], [0], [0], [1], [0, 0, 1, 1], [], []>} : vector<256x144xbf16>, vector<144x256xbf16>, vector<256x256xf32> -> vector<256x256xf32>
    %c0_9 = arith.constant 0 : index
    %c0_10 = arith.constant 0 : index
    %12 = vector.load %arg5[%c0_9, %c0_10] : memref<256x1xf32, #tpu.memory_space<vmem>>, vector<256x1xf32>
    %13 = vector.broadcast %12 : vector<256x1xf32> to vector<256x256xf32>
    %14 = arith.addf %11, %13 : vector<256x256xf32>
    %cst_11 = arith.constant 0.000000e+00 : f32
    %15 = vector.broadcast %cst_11 : f32 to vector<256x256xf32>
    %16 = arith.maximumf %14, %15 : vector<256x256xf32>
    %17 = arith.truncf %16 : vector<256x256xf32> to vector<256x256xbf16>
    %c0_12 = arith.constant 0 : index
    %c0_13 = arith.constant 0 : index
    %18 = vector.load %arg6[%c0_12, %c0_13] : memref<12x256xbf16, #tpu.memory_space<vmem>>, vector<12x256xbf16>
    %cst_14 = arith.constant dense<0.000000e+00> : vector<12x256xf32>
    %19 = tpu.matmul %18, %17, %cst_14 {dimension_numbers = #tpu.dot_dimension_numbers<[1], [0], [0], [1], [0, 0, 1, 1], [], []>} : vector<12x256xbf16>, vector<256x256xbf16>, vector<12x256xf32> -> vector<12x256xf32>
    %c0_15 = arith.constant 0 : index
    %c0_16 = arith.constant 0 : index
    %20 = vector.load %arg7[%c0_15, %c0_16] : memref<12x1xf32, #tpu.memory_space<vmem>>, vector<12x1xf32>
    %21 = vector.broadcast %20 : vector<12x1xf32> to vector<12x256xf32>
    %22 = arith.addf %19, %21 : vector<12x256xf32>
    %cst_17 = arith.constant dense<0xFF800000> : vector<256xf32>
    %23 = vector.multi_reduction <maximumf>, %22, %cst_17 [0] : vector<12x256xf32> to vector<256xf32>
    %24 = vector.shape_cast %23 : vector<256xf32> to vector<1x256xf32>
    %25 = vector.broadcast %24 : vector<1x256xf32> to vector<12x256xf32>
    %26 = arith.subf %22, %25 : vector<12x256xf32>
    %27 = math.exp %26 : vector<12x256xf32>
    %cst_18 = arith.constant dense<0.000000e+00> : vector<256xf32>
    %28 = vector.multi_reduction <add>, %27, %cst_18 [0] : vector<12x256xf32> to vector<256xf32>
    %29 = vector.shape_cast %28 : vector<256xf32> to vector<1x256xf32>
    %30 = vector.broadcast %29 : vector<1x256xf32> to vector<12x256xf32>
    %31 = arith.divf %27, %30 : vector<12x256xf32>
    %c0_19 = arith.constant 0 : index
    %c0_20 = arith.constant 0 : index
    %32 = vector.load %arg8[%c0_19, %c0_20] : memref<12x256xf32, #tpu.memory_space<vmem>>, vector<12x256xf32>
    tpu.vector_store %arg8[%c0_19, %c0_20], %31 {strides = array<i32>} : memref<12x256xf32, #tpu.memory_space<vmem>>, vector<12x256xf32>,
    return
  }
  func.func @transform_0(%arg0: i32) -> (i32, i32) {
    %c0_i32 = arith.constant 0 : i32
    %c0_i32_0 = arith.constant 0 : i32
    return %c0_i32, %arg0 : i32, i32
  }
  func.func @transform_1(%arg0: i32) -> (i32, i32) {
    %c0_i32 = arith.constant 0 : i32
    %c0_i32_0 = arith.constant 0 : i32
    %c0_i32_1 = arith.constant 0 : i32
    return %c0_i32, %c0_i32_0 : i32, i32
  }
  func.func @transform_2(%arg0: i32) -> (i32, i32) {
    %c0_i32 = arith.constant 0 : i32
    %c0_i32_0 = arith.constant 0 : i32
    %c0_i32_1 = arith.constant 0 : i32
    return %c0_i32, %c0_i32_0 : i32, i32
  }
  func.func @transform_3(%arg0: i32) -> (i32, i32) {
    %c0_i32 = arith.constant 0 : i32
    %c0_i32_0 = arith.constant 0 : i32
    %c0_i32_1 = arith.constant 0 : i32
    return %c0_i32, %c0_i32_0 : i32, i32
  }
  func.func @transform_4(%arg0: i32) -> (i32, i32) {
    %c0_i32 = arith.constant 0 : i32
    %c0_i32_0 = arith.constant 0 : i32
    %c0_i32_1 = arith.constant 0 : i32
    return %c0_i32, %c0_i32_0 : i32, i32
  }
  func.func @transform_5(%arg0: i32) -> (i32, i32) {
    %c0_i32 = arith.constant 0 : i32
    %c0_i32_0 = arith.constant 0 : i32
    %c0_i32_1 = arith.constant 0 : i32
    return %c0_i32, %c0_i32_0 : i32, i32
  }
  func.func @transform_6(%arg0: i32) -> (i32, i32) {
    %c0_i32 = arith.constant 0 : i32
    %c0_i32_0 = arith.constant 0 : i32
    %c0_i32_1 = arith.constant 0 : i32
    return %c0_i32, %c0_i32_0 : i32, i32
  }
  func.func @transform_7(%arg0: i32) -> (i32, i32) {
    %c0_i32 = arith.constant 0 : i32
    %c0_i32_0 = arith.constant 0 : i32
    return %c0_i32, %arg0 : i32, i32
  }
}

</mosaic_0001>

<llo_original>
// kernel: tpu_custom_call.1
$region0: #{tpu_custom_call.1}
  #allocation0 [shape = 'u32[]', space=smem, size = 0x4, offset = 0x4, fixed_abs, tag = 'smem constant byte address 0x4 - core index']
  #allocation1 [shape = 'u32[144,128]{1,0:T(1,128)}', space=vmem, size = 0x12000, scoped, tag = 'internal scratch']
  %s0 = inlined_call_operand.vmem [shape: f32[12,256], index: 0, kind: input, shape index: {}]
  %s1 = inlined_call_operand.vmem [shape: bf16[144,12], index: 1, kind: input, shape index: {}]
  %s2 = inlined_call_operand.vmem [shape: f32[144,1], index: 2, kind: input, shape index: {}]
  %s3 = inlined_call_operand.vmem [shape: bf16[256,144], index: 3, kind: input, shape index: {}]
  %s4 = inlined_call_operand.vmem [shape: f32[256,1], index: 4, kind: input, shape index: {}]
  %s5 = inlined_call_operand.vmem [shape: bf16[12,256], index: 5, kind: input, shape index: {}]
  %s6 = inlined_call_operand.vmem [shape: f32[12,1], index: 6, kind: input, shape index: {}]
  %s7 = inlined_call_operand.hbm [shape: f32[12,256], index: 7, kind: output, shape index: {}]
  %s8 = sld [smem:[#allocation0]]
  $region38: #{tpu_custom_call.1} parent=0
    _
  %s10 = ssub.s32 1, %s8
  %s11 = scalar_select 0, %s10, %s8
  $region1: #{tpu_custom_call.1} parent=0
    #allocation2 [shape = 'u8[16384]{0}', space=vmem, size = 0x4000, scoped, tag = 'output window, operand 0, single buffered']
    #allocation3 [shape = 's32[1]{0}', space=sflag, size = 0x4, scoped, tag = 'scoped memory for tpu_custom_call.1']
    %12 = vsyncpa [#allocation3], 0
    // Predicated region
    $region2: #{tpu_custom_call.1} parent=1 // pred_check
      _
    $region3: #{tpu_custom_call.1} parent=1 // pred_check_branch
      %14 = sbr.rel (0) target = $region5
    $region4: #{tpu_custom_call.1} parent=1 // pred_region
      _
    $region5: #{tpu_custom_call.1} parent=1 // pred_fallthru
      _
    // Predicated region
    $region6: #{tpu_custom_call.1} parent=1 // pred_check
      _
    $region7: #{tpu_custom_call.1} parent=1 // pred_check_branch
      %16 = sbr.rel (0) target = $region9
    $region8: #{tpu_custom_call.1} parent=1 // pred_region
      _
    $region9: #{tpu_custom_call.1} parent=1 // pred_fallthru
      _
    // Predicated region
    $region10: #{tpu_custom_call.1} parent=1 // pred_check
      _
    $region11: #{tpu_custom_call.1} parent=1 // pred_check_branch
      %18 = sbr.rel (0) target = $region13
    $region12: #{tpu_custom_call.1} parent=1 // pred_region
      _
    $region13: #{tpu_custom_call.1} parent=1 // pred_fallthru
      _
    // Predicated region
    $region14: #{tpu_custom_call.1} parent=1 // pred_check
      _
    $region15: #{tpu_custom_call.1} parent=1 // pred_check_branch
      %20 = sbr.rel (0) target = $region17
    $region16: #{tpu_custom_call.1} parent=1 // pred_region
      _
    $region17: #{tpu_custom_call.1} parent=1 // pred_fallthru
      _
    // Predicated region
    $region18: #{tpu_custom_call.1} parent=1 // pred_check
      _
    $region19: #{tpu_custom_call.1} parent=1 // pred_check_branch
      %22 = sbr.rel (0) target = $region21
    $region20: #{tpu_custom_call.1} parent=1 // pred_region
      _
    $region21: #{tpu_custom_call.1} parent=1 // pred_fallthru
      _
    // Predicated region
    $region22: #{tpu_custom_call.1} parent=1 // pred_check
      _
    $region23: #{tpu_custom_call.1} parent=1 // pred_check_branch
      %24 = sbr.rel (0) target = $region25
    $region24: #{tpu_custom_call.1} parent=1 // pred_region
      _
    $region25: #{tpu_custom_call.1} parent=1 // pred_fallthru
      _
    // Predicated region
    $region26: #{tpu_custom_call.1} parent=1 // pred_check
      _
    $region27: #{tpu_custom_call.1} parent=1 // pred_check_branch
      %26 = sbr.rel (0) target = $region29
    $region28: #{tpu_custom_call.1} parent=1 // pred_region
      _
    $region29: #{tpu_custom_call.1} parent=1 // pred_fallthru
      _
    %v28 = vld [vmem:[%s0] sm:$0xff]
    %v29 = vld [vmem:[%s0 + $0x8] sm:$0xff]
    %v30 = vld [vmem:[%s0 + $0x10] sm:$0xf]
    %v31 = vld [vmem:[%s0 + $0x18] sm:$0xf]
    %v32 = vpack.c.bf16 %v30, %v28
    %v33 = vpack.c.bf16 %v31, %v29
    %v34 = vld [vmem:[%s1] sm:$0xf]
    %v35 = vld [vmem:[%s1 + $0x4] sm:$0xf]
    %v36 = vld [vmem:[%s1 + $0x8] sm:$0xf]
    %v37 = vld [vmem:[%s1 + $0xc] sm:$0xf]
    %v38 = vld [vmem:[%s1 + $0x10] sm:$0xf]
    %v39 = vld [vmem:[%s1 + $0x14] sm:$0xf]
    %v40 = vld [vmem:[%s1 + $0x18] sm:$0xf]
    %v41 = vld [vmem:[%s1 + $0x1c] sm:$0xf]
    %v42 = vld [vmem:[%s1 + $0x20] sm:$0xf]
    %v43 = vld [vmem:[%s1 + $0x24] sm:$0xf]
    %v44 = vld [vmem:[%s1 + $0x28] sm:$0xf]
    %v45 = vld [vmem:[%s1 + $0x2c] sm:$0xf]
    %v46 = vld [vmem:[%s1 + $0x30] sm:$0xf]
    %v47 = vld [vmem:[%s1 + $0x34] sm:$0xf]
    %v48 = vld [vmem:[%s1 + $0x38] sm:$0xf]
    %v49 = vld [vmem:[%s1 + $0x3c] sm:$0xf]
    %v50 = vld [vmem:[%s1 + $0x40] sm:$0xf]
    %v51 = vld [vmem:[%s1 + $0x44] sm:$0xf]
    %v52 = vld [vmem:[%s2] sm:$0xff]
    %v53 = vld [vmem:[%s2 + $0x8] sm:$0xff]
    %v54 = vld [vmem:[%s2 + $0x10] sm:$0xff]
    %v55 = vld [vmem:[%s2 + $0x18] sm:$0xff]
    %v56 = vld [vmem:[%s2 + $0x20] sm:$0xff]
    %v57 = vld [vmem:[%s2 + $0x28] sm:$0xff]
    %v58 = vld [vmem:[%s2 + $0x30] sm:$0xff]
    %v59 = vld [vmem:[%s2 + $0x38] sm:$0xff]
    %v60 = vld [vmem:[%s2 + $0x40] sm:$0xff]
    %v61 = vld [vmem:[%s2 + $0x48] sm:$0xff]
    %v62 = vld [vmem:[%s2 + $0x50] sm:$0xff]
    %v63 = vld [vmem:[%s2 + $0x58] sm:$0xff]
    %v64 = vld [vmem:[%s2 + $0x60] sm:$0xff]
    %v65 = vld [vmem:[%s2 + $0x68] sm:$0xff]
    %v66 = vld [vmem:[%s2 + $0x70] sm:$0xff]
    %v67 = vld [vmem:[%s2 + $0x78] sm:$0xff]
    %v68 = vld [vmem:[%s2 + $0x80] sm:$0xff]
    %v69 = vld [vmem:[%s2 + $0x88] sm:$0xff]
    %71 = vset.pattern.permute.xlu0 0
    %72 = vperm.xlu0 %71, %v52
    %v73 = vpop.permute.xlu0 %72
    %76 = vset.pattern.permute.xlu0 0
    %77 = vperm.xlu0 %76, %v53
    %v78 = vpop.permute.xlu0 %77
    %81 = vset.pattern.permute.xlu0 0
    %82 = vperm.xlu0 %81, %v54
    %v83 = vpop.permute.xlu0 %82
    %86 = vset.pattern.permute.xlu0 0
    %87 = vperm.xlu0 %86, %v55
    %v88 = vpop.permute.xlu0 %87
    %91 = vset.pattern.permute.xlu0 0
    %92 = vperm.xlu0 %91, %v56
    %v93 = vpop.permute.xlu0 %92
    %96 = vset.pattern.permute.xlu0 0
    %97 = vperm.xlu0 %96, %v57
    %v98 = vpop.permute.xlu0 %97
    %101 = vset.pattern.permute.xlu0 0
    %102 = vperm.xlu0 %101, %v58
    %v103 = vpop.permute.xlu0 %102
    %106 = vset.pattern.permute.xlu0 0
    %107 = vperm.xlu0 %106, %v59
    %v108 = vpop.permute.xlu0 %107
    %111 = vset.pattern.permute.xlu0 0
    %112 = vperm.xlu0 %111, %v60
    %v113 = vpop.permute.xlu0 %112
    %116 = vset.pattern.permute.xlu0 0
    %117 = vperm.xlu0 %116, %v61
    %v118 = vpop.permute.xlu0 %117
    %121 = vset.pattern.permute.xlu0 0
    %122 = vperm.xlu0 %121, %v62
    %v123 = vpop.permute.xlu0 %122
    %126 = vset.pattern.permute.xlu0 0
    %127 = vperm.xlu0 %126, %v63
    %v128 = vpop.permute.xlu0 %127
    %131 = vset.pattern.permute.xlu0 0
    %132 = vperm.xlu0 %131, %v64
    %v133 = vpop.permute.xlu0 %132
    %136 = vset.pattern.permute.xlu0 0
    %137 = vperm.xlu0 %136, %v65
    %v138 = vpop.permute.xlu0 %137
    %141 = vset.pattern.permute.xlu0 0
    %142 = vperm.xlu0 %141, %v66
    %v143 = vpop.permute.xlu0 %142
    %146 = vset.pattern.permute.xlu0 0
    %147 = vperm.xlu0 %146, %v67
    %v148 = vpop.permute.xlu0 %147
    %151 = vset.pattern.permute.xlu0 0
    %152 = vperm.xlu0 %151, %v68
    %v153 = vpop.permute.xlu0 %152
    %156 = vset.pattern.permute.xlu0 0
    %157 = vperm.xlu0 %156, %v69
    %v158 = vpop.permute.xlu0 %157
    %v178 = vunpack.c.l.b16 %v34
    %v179 = vunpack.c.l.b16 %v35
    %v180 = vunpack.c.l.b16 %v36
    %v181 = vunpack.c.l.b16 %v37
    %v182 = vunpack.c.l.b16 %v38
    %v183 = vunpack.c.l.b16 %v39
    %v184 = vunpack.c.l.b16 %v40
    %v185 = vunpack.c.l.b16 %v41
    %v186 = vunpack.c.l.b16 %v42
    %v187 = vunpack.c.l.b16 %v43
    %v188 = vunpack.c.l.b16 %v44
    %v189 = vunpack.c.l.b16 %v45
    %v190 = vunpack.c.l.b16 %v46
    %v191 = vunpack.c.l.b16 %v47
    %v192 = vunpack.c.l.b16 %v48
    %v193 = vunpack.c.l.b16 %v49
    %v194 = vunpack.c.l.b16 %v50
    %v195 = vunpack.c.l.b16 %v51
    %v196 = vpack.c.b16 %v179, %v178
    %v197 = vpack.c.b16 %v181, %v180
    %v198 = vpack.c.b16 %v183, %v182
    %v199 = vpack.c.b16 %v185, %v184
    %v200 = vpack.c.b16 %v187, %v186
    %v201 = vpack.c.b16 %v189, %v188
    %v202 = vpack.c.b16 %v191, %v190
    %v203 = vpack.c.b16 %v193, %v192
    %v204 = vpack.c.b16 %v195, %v194
    %vm205 = vcmask 97280
    %v207 = vsel %vm205, %v196, 0
    %v210 = vsel %vm205, %v197, 0
    %v213 = vsel %vm205, %v198, 0
    %v216 = vsel %vm205, %v199, 0
    %v219 = vsel %vm205, %v200, 0
    %v222 = vsel %vm205, %v201, 0
    %v225 = vsel %vm205, %v202, 0
    %v228 = vsel %vm205, %v203, 0
    %v231 = vsel %vm205, %v204, 0
    %vm233 = vcmask 1045504
    %v235 = vsel %vm233, %v32, 0
    %v238 = vsel %vm233, %v33, 0
    %240 = vmatprep.subr.bf16.mxu0 %v238
    %241 = vmatpush1.bf16.msra.mxu0 %v235
    %242 = vmatprep.subr.bf16.mxu0 0
    %243 = vmatpush1.bf16.msra.mxu0 0
    %244 = vmatprep.subr.bf16.mxu0 0
    %245 = vmatpush1.bf16.msra.mxu0 0
    %246 = vmatprep.subr.bf16.mxu0 0
    %247 = vmatpush1.bf16.msra.mxu0 0
    %248 = vmatprep.subr.bf16.mxu0 0
    %249 = vmatpush1.bf16.msra.mxu0 0
    %250 = vmatprep.subr.bf16.mxu0 0
    %251 = vmatpush1.bf16.msra.mxu0 0
    %252 = vmatprep.subr.bf16.mxu0 0
    %253 = vmatpush1.bf16.msra.mxu0 0
    %254 = vmatprep.subr.bf16.mxu0 0
    %255 = vmatpush1.bf16.msra.mxu0 0
    %256 = vmatprep.subr.bf16.mxu0 0
    %257 = vmatpush1.bf16.msra.mxu0 0
    %258 = vmatprep.subr.bf16.mxu0 0
    %259 = vmatpush1.bf16.msra.mxu0 0
    %260 = vmatprep.subr.bf16.mxu0 0
    %261 = vmatpush1.bf16.msra.mxu0 0
    %262 = vmatprep.subr.bf16.mxu0 0
    %263 = vmatpush1.bf16.msra.mxu0 0
    %264 = vmatprep.subr.bf16.mxu0 0
    %265 = vmatpush1.bf16.msra.mxu0 0
    %266 = vmatprep.subr.bf16.mxu0 0
    %267 = vmatpush1.bf16.msra.mxu0 0
    %268 = vmatprep.subr.bf16.mxu0 0
    %269 = vmatpush1.bf16.msra.mxu0 0
    %270 = vmatprep.subr.bf16.mxu0 0
    %271 = vmatpush1.bf16.msra.mxu0 0
    %272 = vmatprep.mubr.bf16.mxu0 0
    %273 = vmatmul.mubr.bf16.gmra.mrb[0].mxu0 %v207
    %v274 = vpop.f32.mrb[0].mxu0
    %v275 = vadd.f32 %v73, %v274
    %v276 = vpop.f32.mrb[0].mxu0
    %v277 = vadd.f32 %v73, %v276
    %v278 = vpop.f32.mrb[0].mxu0
    %v279 = vadd.f32 %v78, %v278
    %v280 = vpop.f32.mrb[0].mxu0
    %v281 = vadd.f32 %v78, %v280
    %282 = vmatprep.mubr.bf16.mxu0 0
    %283 = vmatmul.mubr.bf16.gmra.mrb[0].mxu0 %v210
    %v284 = vpop.f32.mrb[0].mxu0
    %v285 = vadd.f32 %v83, %v284
    %v286 = vpop.f32.mrb[0].mxu0
    %v287 = vadd.f32 %v83, %v286
    %v288 = vpop.f32.mrb[0].mxu0
    %v289 = vadd.f32 %v88, %v288
    %v290 = vpop.f32.mrb[0].mxu0
    %v291 = vadd.f32 %v88, %v290
    %292 = vmatprep.mubr.bf16.mxu0 0
    %293 = vmatmul.mubr.bf16.gmra.mrb[0].mxu0 %v213
    %v294 = vpop.f32.mrb[0].mxu0
    %v295 = vadd.f32 %v93, %v294
    %v296 = vpop.f32.mrb[0].mxu0
    %v297 = vadd.f32 %v93, %v296
    %v298 = vpop.f32.mrb[0].mxu0
    %v299 = vadd.f32 %v98, %v298
    %v300 = vpop.f32.mrb[0].mxu0
    %v301 = vadd.f32 %v98, %v300
    %302 = vmatprep.mubr.bf16.mxu0 0
    %303 = vmatmul.mubr.bf16.gmra.mrb[0].mxu0 %v216
    %v304 = vpop.f32.mrb[0].mxu0
    %v305 = vadd.f32 %v103, %v304
    %v306 = vpop.f32.mrb[0].mxu0
    %v307 = vadd.f32 %v103, %v306
    %v308 = vpop.f32.mrb[0].mxu0
    %v309 = vadd.f32 %v108, %v308
    %v310 = vpop.f32.mrb[0].mxu0
    %v311 = vadd.f32 %v108, %v310
    %312 = vmatprep.mubr.bf16.mxu0 0
    %313 = vmatmul.mubr.bf16.gmra.mrb[0].mxu0 %v219
    %v314 = vpop.f32.mrb[0].mxu0
    %v315 = vadd.f32 %v113, %v314
    %v316 = vpop.f32.mrb[0].mxu0
    %v317 = vadd.f32 %v113, %v316
    %v318 = vpop.f32.mrb[0].mxu0
    %v319 = vadd.f32 %v118, %v318
    %v320 = vpop.f32.mrb[0].mxu0
    %v321 = vadd.f32 %v118, %v320
    %322 = vmatprep.mubr.bf16.mxu0 0
    %323 = vmatmul.mubr.bf16.gmra.mrb[0].mxu0 %v222
    %v324 = vpop.f32.mrb[0].mxu0
    %v325 = vadd.f32 %v123, %v324
    %v326 = vpop.f32.mrb[0].mxu0
    %v327 = vadd.f32 %v123, %v326
    %v328 = vpop.f32.mrb[0].mxu0
    %v329 = vadd.f32 %v128, %v328
    %v330 = vpop.f32.mrb[0].mxu0
    %v331 = vadd.f32 %v128, %v330
    %332 = vmatprep.mubr.bf16.mxu0 0
    %333 = vmatmul.mubr.bf16.gmra.mrb[0].mxu0 %v225
    %v334 = vpop.f32.mrb[0].mxu0
    %v335 = vadd.f32 %v133, %v334
    %v336 = vpop.f32.mrb[0].mxu0
    %v337 = vadd.f32 %v133, %v336
    %v338 = vpop.f32.mrb[0].mxu0
    %v339 = vadd.f32 %v138, %v338
    %v340 = vpop.f32.mrb[0].mxu0
    %v341 = vadd.f32 %v138, %v340
    %342 = vmatprep.mubr.bf16.mxu0 0
    %343 = vmatmul.mubr.bf16.gmra.mrb[0].mxu0 %v228
    %v344 = vpop.f32.mrb[0].mxu0
    %v345 = vadd.f32 %v143, %v344
    %v346 = vpop.f32.mrb[0].mxu0
    %v347 = vadd.f32 %v143, %v346
    %v348 = vpop.f32.mrb[0].mxu0
    %v349 = vadd.f32 %v148, %v348
    %v350 = vpop.f32.mrb[0].mxu0
    %v351 = vadd.f32 %v148, %v350
    %352 = vmatprep.mubr.bf16.mxu0 0
    %353 = vmatmul.mubr.bf16.gmra.mrb[0].mxu0 %v231
    %v354 = vpop.f32.mrb[0].mxu0
    %v355 = vadd.f32 %v153, %v354
    %v356 = vpop.f32.mrb[0].mxu0
    %v357 = vadd.f32 %v153, %v356
    %v358 = vpop.f32.mrb[0].mxu0
    %v359 = vadd.f32 %v158, %v358
    %v360 = vpop.f32.mrb[0].mxu0
    %v361 = vadd.f32 %v158, %v360
    %362 = vdwg.mxu0
    %v363 = vmax.f32 %v275, 0.0
    %v364 = vmax.f32 %v277, 0.0
    %v365 = vmax.f32 %v279, 0.0
    %v366 = vmax.f32 %v281, 0.0
    %v367 = vmax.f32 %v285, 0.0
    %v368 = vmax.f32 %v287, 0.0
    %v369 = vmax.f32 %v289, 0.0
    %v370 = vmax.f32 %v291, 0.0
    %v371 = vmax.f32 %v295, 0.0
    %v372 = vmax.f32 %v297, 0.0
    %v373 = vmax.f32 %v299, 0.0
    %v374 = vmax.f32 %v301, 0.0
    %v375 = vmax.f32 %v305, 0.0
    %v376 = vmax.f32 %v307, 0.0
    %v377 = vmax.f32 %v309, 0.0
    %v378 = vmax.f32 %v311, 0.0
    %v379 = vmax.f32 %v315, 0.0
    %v380 = vmax.f32 %v317, 0.0
    %v381 = vmax.f32 %v319, 0.0
    %v382 = vmax.f32 %v321, 0.0
    %v383 = vmax.f32 %v325, 0.0
    %v384 = vmax.f32 %v327, 0.0
    %v385 = vmax.f32 %v329, 0.0
    %v386 = vmax.f32 %v331, 0.0
    %v387 = vmax.f32 %v335, 0.0
    %v388 = vmax.f32 %v337, 0.0
    %v389 = vmax.f32 %v339, 0.0
    %v390 = vmax.f32 %v341, 0.0
    %v391 = vmax.f32 %v345, 0.0
    %v392 = vmax.f32 %v347, 0.0
    %v393 = vmax.f32 %v349, 0.0
    %v394 = vmax.f32 %v351, 0.0
    %v395 = vmax.f32 %v355, 0.0
    %v396 = vmax.f32 %v357, 0.0
    %v397 = vmax.f32 %v359, 0.0
    %v398 = vmax.f32 %v361, 0.0
    %v399 = vpack.c.bf16 %v365, %v363
    %v400 = vpack.c.bf16 %v366, %v364
    %v401 = vpack.c.bf16 %v369, %v367
    %v402 = vpack.c.bf16 %v370, %v368
    %v403 = vpack.c.bf16 %v373, %v371
    %v404 = vpack.c.bf16 %v374, %v372
    %v405 = vpack.c.bf16 %v377, %v375
    %v406 = vpack.c.bf16 %v378, %v376
    %v407 = vpack.c.bf16 %v381, %v379
    %v408 = vpack.c.bf16 %v382, %v380
    %v409 = vpack.c.bf16 %v385, %v383
    %v410 = vpack.c.bf16 %v386, %v384
    %v411 = vpack.c.bf16 %v389, %v387
    %v412 = vpack.c.bf16 %v390, %v388
    %v413 = vpack.c.bf16 %v393, %v391
    %v414 = vpack.c.bf16 %v394, %v392
    %v415 = vpack.c.bf16 %v397, %v395
    %v416 = vpack.c.bf16 %v398, %v396
    %v417 = vld [vmem:[%s3] sm:$0xff]
    %v418 = vld [vmem:[%s3 + $0x8] sm:$0xff]
    %v419 = vld [vmem:[%s3 + $0x10] sm:$0xff]
    %v420 = vld [vmem:[%s3 + $0x18] sm:$0xff]
    %v421 = vld [vmem:[%s3 + $0x20] sm:$0xff]
    %v422 = vld [vmem:[%s3 + $0x28] sm:$0xff]
    %v423 = vld [vmem:[%s3 + $0x30] sm:$0xff]
    %v424 = vld [vmem:[%s3 + $0x38] sm:$0xff]
    %v425 = vld [vmem:[%s3 + $0x40] sm:$0xff]
    %v426 = vld [vmem:[%s3 + $0x48] sm:$0xff]
    %v427 = vld [vmem:[%s3 + $0x50] sm:$0xff]
    %v428 = vld [vmem:[%s3 + $0x58] sm:$0xff]
    %v429 = vld [vmem:[%s3 + $0x60] sm:$0xff]
    %v430 = vld [vmem:[%s3 + $0x68] sm:$0xff]
    %v431 = vld [vmem:[%s3 + $0x70] sm:$0xff]
    %v432 = vld [vmem:[%s3 + $0x78] sm:$0xff]
    %v433 = vld [vmem:[%s3 + $0x80] sm:$0xff]
    %v434 = vld [vmem:[%s3 + $0x88] sm:$0xff]
    %v435 = vld [vmem:[%s3 + $0x90] sm:$0xff]
    %v436 = vld [vmem:[%s3 + $0x98] sm:$0xff]
    %v437 = vld [vmem:[%s3 + $0xa0] sm:$0xff]
    %v438 = vld [vmem:[%s3 + $0xa8] sm:$0xff]
    %v439 = vld [vmem:[%s3 + $0xb0] sm:$0xff]
    %v440 = vld [vmem:[%s3 + $0xb8] sm:$0xff]
    %v441 = vld [vmem:[%s3 + $0xc0] sm:$0xff]
    %v442 = vld [vmem:[%s3 + $0xc8] sm:$0xff]
    %v443 = vld [vmem:[%s3 + $0xd0] sm:$0xff]
    %v444 = vld [vmem:[%s3 + $0xd8] sm:$0xff]
    %v445 = vld [vmem:[%s3 + $0xe0] sm:$0xff]
    %v446 = vld [vmem:[%s3 + $0xe8] sm:$0xff]
    %v447 = vld [vmem:[%s3 + $0xf0] sm:$0xff]
    %v448 = vld [vmem:[%s3 + $0xf8] sm:$0xff]
    %v449 = vld [vmem:[%s4] sm:$0xff]
    %v450 = vld [vmem:[%s4 + $0x8] sm:$0xff]
    %v451 = vld [vmem:[%s4 + $0x10] sm:$0xff]
    %v452 = vld [vmem:[%s4 + $0x18] sm:$0xff]
    %v453 = vld [vmem:[%s4 + $0x20] sm:$0xff]
    %v454 = vld [vmem:[%s4 + $0x28] sm:$0xff]
    %v455 = vld [vmem:[%s4 + $0x30] sm:$0xff]
    %v456 = vld [vmem:[%s4 + $0x38] sm:$0xff]
    %v457 = vld [vmem:[%s4 + $0x40] sm:$0xff]
    %v458 = vld [vmem:[%s4 + $0x48] sm:$0xff]
    %v459 = vld [vmem:[%s4 + $0x50] sm:$0xff]
    %v460 = vld [vmem:[%s4 + $0x58] sm:$0xff]
    %v461 = vld [vmem:[%s4 + $0x60] sm:$0xff]
    %v462 = vld [vmem:[%s4 + $0x68] sm:$0xff]
    %v463 = vld [vmem:[%s4 + $0x70] sm:$0xff]
    %v464 = vld [vmem:[%s4 + $0x78] sm:$0xff]
    %v465 = vld [vmem:[%s4 + $0x80] sm:$0xff]
    %v466 = vld [vmem:[%s4 + $0x88] sm:$0xff]
    %v467 = vld [vmem:[%s4 + $0x90] sm:$0xff]
    %v468 = vld [vmem:[%s4 + $0x98] sm:$0xff]
    %v469 = vld [vmem:[%s4 + $0xa0] sm:$0xff]
    %v470 = vld [vmem:[%s4 + $0xa8] sm:$0xff]
    %v471 = vld [vmem:[%s4 + $0xb0] sm:$0xff]
    %v472 = vld [vmem:[%s4 + $0xb8] sm:$0xff]
    %v473 = vld [vmem:[%s4 + $0xc0] sm:$0xff]
    %v474 = vld [vmem:[%s4 + $0xc8] sm:$0xff]
    %v475 = vld [vmem:[%s4 + $0xd0] sm:$0xff]
    %v476 = vld [vmem:[%s4 + $0xd8] sm:$0xff]
    %v477 = vld [vmem:[%s4 + $0xe0] sm:$0xff]
    %v478 = vld [vmem:[%s4 + $0xe8] sm:$0xff]
    %v479 = vld [vmem:[%s4 + $0xf0] sm:$0xff]
    %v480 = vld [vmem:[%s4 + $0xf8] sm:$0xff]
    %482 = vset.pattern.permute.xlu0 0
    %483 = vperm.xlu0 %482, %v449
    %v484 = vpop.permute.xlu0 %483
    %487 = vset.pattern.permute.xlu0 0
    %488 = vperm.xlu0 %487, %v450
    %v489 = vpop.permute.xlu0 %488
    %492 = vset.pattern.permute.xlu0 0
    %493 = vperm.xlu0 %492, %v451
    %v494 = vpop.permute.xlu0 %493
    %497 = vset.pattern.permute.xlu0 0
    %498 = vperm.xlu0 %497, %v452
    %v499 = vpop.permute.xlu0 %498
    %502 = vset.pattern.permute.xlu0 0
    %503 = vperm.xlu0 %502, %v453
    %v504 = vpop.permute.xlu0 %503
    %507 = vset.pattern.permute.xlu0 0
    %508 = vperm.xlu0 %507, %v454
    %v509 = vpop.permute.xlu0 %508
    %512 = vset.pattern.permute.xlu0 0
    %513 = vperm.xlu0 %512, %v455
    %v514 = vpop.permute.xlu0 %513
    %517 = vset.pattern.permute.xlu0 0
    %518 = vperm.xlu0 %517, %v456
    %v519 = vpop.permute.xlu0 %518
    %522 = vset.pattern.permute.xlu0 0
    %523 = vperm.xlu0 %522, %v457
    %v524 = vpop.permute.xlu0 %523
    %527 = vset.pattern.permute.xlu0 0
    %528 = vperm.xlu0 %527, %v458
    %v529 = vpop.permute.xlu0 %528
    %532 = vset.pattern.permute.xlu0 0
    %533 = vperm.xlu0 %532, %v459
    %v534 = vpop.permute.xlu0 %533
    %537 = vset.pattern.permute.xlu0 0
    %538 = vperm.xlu0 %537, %v460
    %v539 = vpop.permute.xlu0 %538
    %542 = vset.pattern.permute.xlu0 0
    %543 = vperm.xlu0 %542, %v461
    %v544 = vpop.permute.xlu0 %543
    %547 = vset.pattern.permute.xlu0 0
    %548 = vperm.xlu0 %547, %v462
    %v549 = vpop.permute.xlu0 %548
    %552 = vset.pattern.permute.xlu0 0
    %553 = vperm.xlu0 %552, %v463
    %v554 = vpop.permute.xlu0 %553
    %557 = vset.pattern.permute.xlu0 0
    %558 = vperm.xlu0 %557, %v464
    %v559 = vpop.permute.xlu0 %558
    %562 = vset.pattern.permute.xlu0 0
    %563 = vperm.xlu0 %562, %v465
    %v564 = vpop.permute.xlu0 %563
    %567 = vset.pattern.permute.xlu0 0
    %568 = vperm.xlu0 %567, %v466
    %v569 = vpop.permute.xlu0 %568
    %572 = vset.pattern.permute.xlu0 0
    %573 = vperm.xlu0 %572, %v467
    %v574 = vpop.permute.xlu0 %573
    %577 = vset.pattern.permute.xlu0 0
    %578 = vperm.xlu0 %577, %v468
    %v579 = vpop.permute.xlu0 %578
    %582 = vset.pattern.permute.xlu0 0
    %583 = vperm.xlu0 %582, %v469
    %v584 = vpop.permute.xlu0 %583
    %587 = vset.pattern.permute.xlu0 0
    %588 = vperm.xlu0 %587, %v470
    %v589 = vpop.permute.xlu0 %588
    %592 = vset.pattern.permute.xlu0 0
    %593 = vperm.xlu0 %592, %v471
    %v594 = vpop.permute.xlu0 %593
    %597 = vset.pattern.permute.xlu0 0
    %598 = vperm.xlu0 %597, %v472
    %v599 = vpop.permute.xlu0 %598
    %602 = vset.pattern.permute.xlu0 0
    %603 = vperm.xlu0 %602, %v473
    %v604 = vpop.permute.xlu0 %603
    %607 = vset.pattern.permute.xlu0 0
    %608 = vperm.xlu0 %607, %v474
    %v609 = vpop.permute.xlu0 %608
    %612 = vset.pattern.permute.xlu0 0
    %613 = vperm.xlu0 %612, %v475
    %v614 = vpop.permute.xlu0 %613
    %617 = vset.pattern.permute.xlu0 0
    %618 = vperm.xlu0 %617, %v476
    %v619 = vpop.permute.xlu0 %618
    %622 = vset.pattern.permute.xlu0 0
    %623 = vperm.xlu0 %622, %v477
    %v624 = vpop.permute.xlu0 %623
    %627 = vset.pattern.permute.xlu0 0
    %628 = vperm.xlu0 %627, %v478
    %v629 = vpop.permute.xlu0 %628
    %632 = vset.pattern.permute.xlu0 0
    %633 = vperm.xlu0 %632, %v479
    %v634 = vpop.permute.xlu0 %633
    %637 = vset.pattern.permute.xlu0 0
    %638 = vperm.xlu0 %637, %v480
    %v639 = vpop.permute.xlu0 %638
    %v673 = vunpack.c.l.b16 %v417
    %v674 = vunpack.c.h.b16 %v417
    %v675 = vunpack.c.l.b16 %v418
    %v676 = vunpack.c.h.b16 %v418
    %v677 = vunpack.c.l.b16 %v419
    %v678 = vunpack.c.h.b16 %v419
    %v679 = vunpack.c.l.b16 %v420
    %v680 = vunpack.c.h.b16 %v420
    %v681 = vunpack.c.l.b16 %v421
    %v682 = vunpack.c.h.b16 %v421
    %v683 = vunpack.c.l.b16 %v422
    %v684 = vunpack.c.h.b16 %v422
    %v685 = vunpack.c.l.b16 %v423
    %v686 = vunpack.c.h.b16 %v423
    %v687 = vunpack.c.l.b16 %v424
    %v688 = vunpack.c.h.b16 %v424
    %v689 = vunpack.c.l.b16 %v425
    %v690 = vunpack.c.h.b16 %v425
    %v691 = vunpack.c.l.b16 %v426
    %v692 = vunpack.c.h.b16 %v426
    %v693 = vunpack.c.l.b16 %v427
    %v694 = vunpack.c.h.b16 %v427
    %v695 = vunpack.c.l.b16 %v428
    %v696 = vunpack.c.h.b16 %v428
    %v697 = vunpack.c.l.b16 %v429
    %v698 = vunpack.c.h.b16 %v429
    %v699 = vunpack.c.l.b16 %v430
    %v700 = vunpack.c.h.b16 %v430
    %v701 = vunpack.c.l.b16 %v431
    %v702 = vunpack.c.h.b16 %v431
    %v703 = vunpack.c.l.b16 %v432
    %v704 = vunpack.c.h.b16 %v432
    %v705 = vunpack.c.l.b16 %v433
    %v706 = vunpack.c.h.b16 %v433
    %v707 = vunpack.c.l.b16 %v434
    %v708 = vunpack.c.h.b16 %v434
    %v709 = vunpack.c.l.b16 %v435
    %v710 = vunpack.c.h.b16 %v435
    %v711 = vunpack.c.l.b16 %v436
    %v712 = vunpack.c.h.b16 %v436
    %v713 = vunpack.c.l.b16 %v437
    %v714 = vunpack.c.h.b16 %v437
    %v715 = vunpack.c.l.b16 %v438
    %v716 = vunpack.c.h.b16 %v438
    %v717 = vunpack.c.l.b16 %v439
    %v718 = vunpack.c.h.b16 %v439
    %v719 = vunpack.c.l.b16 %v440
    %v720 = vunpack.c.h.b16 %v440
    %v721 = vunpack.c.l.b16 %v441
    %v722 = vunpack.c.h.b16 %v441
    %v723 = vunpack.c.l.b16 %v442
    %v724 = vunpack.c.h.b16 %v442
    %v725 = vunpack.c.l.b16 %v443
    %v726 = vunpack.c.h.b16 %v443
    %v727 = vunpack.c.l.b16 %v444
    %v728 = vunpack.c.h.b16 %v444
    %v729 = vunpack.c.l.b16 %v445
    %v730 = vunpack.c.h.b16 %v445
    %v731 = vunpack.c.l.b16 %v446
    %v732 = vunpack.c.h.b16 %v446
    %v733 = vunpack.c.l.b16 %v447
    %v734 = vunpack.c.h.b16 %v447
    %v735 = vunpack.c.l.b16 %v448
    %v736 = vunpack.c.h.b16 %v448
    %v737 = vpack.c.b16 %v675, %v673
    %v738 = vpack.c.b16 %v676, %v674
    %v739 = vpack.c.b16 %v679, %v677
    %v740 = vpack.c.b16 %v680, %v678
    %v741 = vpack.c.b16 %v683, %v681
    %v742 = vpack.c.b16 %v684, %v682
    %v743 = vpack.c.b16 %v687, %v685
    %v744 = vpack.c.b16 %v688, %v686
    %v745 = vpack.c.b16 %v691, %v689
    %v746 = vpack.c.b16 %v692, %v690
    %v747 = vpack.c.b16 %v695, %v693
    %v748 = vpack.c.b16 %v696, %v694
    %v749 = vpack.c.b16 %v699, %v697
    %v750 = vpack.c.b16 %v700, %v698
    %v751 = vpack.c.b16 %v703, %v701
    %v752 = vpack.c.b16 %v704, %v702
    %v753 = vpack.c.b16 %v707, %v705
    %v754 = vpack.c.b16 %v708, %v706
    %v755 = vpack.c.b16 %v711, %v709
    %v756 = vpack.c.b16 %v712, %v710
    %v757 = vpack.c.b16 %v715, %v713
    %v758 = vpack.c.b16 %v716, %v714
    %v759 = vpack.c.b16 %v719, %v717
    %v760 = vpack.c.b16 %v720, %v718
    %v761 = vpack.c.b16 %v723, %v721
    %v762 = vpack.c.b16 %v724, %v722
    %v763 = vpack.c.b16 %v727, %v725
    %v764 = vpack.c.b16 %v728, %v726
    %v765 = vpack.c.b16 %v731, %v729
    %v766 = vpack.c.b16 %v732, %v730
    %v767 = vpack.c.b16 %v735, %v733
    %v768 = vpack.c.b16 %v736, %v734
    %vm785 = vcmask 130048
    %v787 = vsel %vm785, %v738, 0
    %v790 = vsel %vm785, %v740, 0
    %v793 = vsel %vm785, %v742, 0
    %v796 = vsel %vm785, %v744, 0
    %v799 = vsel %vm785, %v746, 0
    %v802 = vsel %vm785, %v748, 0
    %v805 = vsel %vm785, %v750, 0
    %v808 = vsel %vm785, %v752, 0
    %v811 = vsel %vm785, %v754, 0
    %v814 = vsel %vm785, %v756, 0
    %v817 = vsel %vm785, %v758, 0
    %v820 = vsel %vm785, %v760, 0
    %v823 = vsel %vm785, %v762, 0
    %v826 = vsel %vm785, %v764, 0
    %v829 = vsel %vm785, %v766, 0
    %v832 = vsel %vm785, %v768, 0
    %834 = vmatprep.subr.bf16.mxu0 %v400
    %835 = vmatpush1.bf16.msra.mxu0 %v399
    %836 = vmatprep.subr.bf16.mxu0 %v402
    %837 = vmatpush1.bf16.msra.mxu0 %v401
    %838 = vmatprep.subr.bf16.mxu0 %v404
    %839 = vmatpush1.bf16.msra.mxu0 %v403
    %840 = vmatprep.subr.bf16.mxu0 %v406
    %841 = vmatpush1.bf16.msra.mxu0 %v405
    %842 = vmatprep.subr.bf16.mxu0 %v408
    %843 = vmatpush1.bf16.msra.mxu0 %v407
    %844 = vmatprep.subr.bf16.mxu0 %v410
    %845 = vmatpush1.bf16.msra.mxu0 %v409
    %846 = vmatprep.subr.bf16.mxu0 %v412
    %847 = vmatpush1.bf16.msra.mxu0 %v411
    %848 = vmatprep.subr.bf16.mxu0 %v414
    %849 = vmatpush1.bf16.msra.mxu0 %v413
    %850 = vmatprep.subr.bf16.mxu0 %v416
    %851 = vmatpush1.bf16.msra.mxu0 %v415
    %852 = vmatprep.subr.bf16.mxu0 0
    %853 = vmatpush1.bf16.msra.mxu0 0
    %854 = vmatprep.subr.bf16.mxu0 0
    %855 = vmatpush1.bf16.msra.mxu0 0
    %856 = vmatprep.subr.bf16.mxu0 0
    %857 = vmatpush1.bf16.msra.mxu0 0
    %858 = vmatprep.subr.bf16.mxu0 0
    %859 = vmatpush1.bf16.msra.mxu0 0
    %860 = vmatprep.subr.bf16.mxu0 0
    %861 = vmatpush1.bf16.msra.mxu0 0
    %862 = vmatprep.subr.bf16.mxu0 0
    %863 = vmatpush1.bf16.msra.mxu0 0
    %864 = vmatprep.subr.bf16.mxu0 0
    %865 = vmatpush1.bf16.msra.mxu0 0
    %866 = vmatprep.mubr.bf16.mxu0 %v787
    %867 = vmatmul.mubr.bf16.gmra.mrb[0].mxu0 %v737
    %v868 = vpop.f32.mrb[0].mxu0
    %v869 = vadd.f32 %v484, %v868
    %v870 = vpop.f32.mrb[0].mxu0
    %v871 = vadd.f32 %v484, %v870
    %v872 = vpop.f32.mrb[0].mxu0
    %v873 = vadd.f32 %v489, %v872
    %v874 = vpop.f32.mrb[0].mxu0
    %v875 = vadd.f32 %v489, %v874
    %876 = vmatprep.mubr.bf16.mxu0 %v790
    %877 = vmatmul.mubr.bf16.gmra.mrb[0].mxu0 %v739
    %v878 = vpop.f32.mrb[0].mxu0
    %v879 = vadd.f32 %v494, %v878
    %v880 = vpop.f32.mrb[0].mxu0
    %v881 = vadd.f32 %v494, %v880
    %v882 = vpop.f32.mrb[0].mxu0
    %v883 = vadd.f32 %v499, %v882
    %v884 = vpop.f32.mrb[0].mxu0
    %v885 = vadd.f32 %v499, %v884
    %886 = vmatprep.mubr.bf16.mxu0 %v793
    %887 = vmatmul.mubr.bf16.gmra.mrb[0].mxu0 %v741
    %v888 = vpop.f32.mrb[0].mxu0
    %v889 = vadd.f32 %v504, %v888
    %v890 = vpop.f32.mrb[0].mxu0
    %v891 = vadd.f32 %v504, %v890
    %v892 = vpop.f32.mrb[0].mxu0
    %v893 = vadd.f32 %v509, %v892
    %v894 = vpop.f32.mrb[0].mxu0
    %v895 = vadd.f32 %v509, %v894
    %896 = vmatprep.mubr.bf16.mxu0 %v796
    %897 = vmatmul.mubr.bf16.gmra.mrb[0].mxu0 %v743
    %v898 = vpop.f32.mrb[0].mxu0
    %v899 = vadd.f32 %v514, %v898
    %v900 = vpop.f32.mrb[0].mxu0
    %v901 = vadd.f32 %v514, %v900
    %v902 = vpop.f32.mrb[0].mxu0
    %v903 = vadd.f32 %v519, %v902
    %v904 = vpop.f32.mrb[0].mxu0
    %v905 = vadd.f32 %v519, %v904
    %906 = vmatprep.mubr.bf16.mxu0 %v799
    %907 = vmatmul.mubr.bf16.gmra.mrb[0].mxu0 %v745
    %v908 = vpop.f32.mrb[0].mxu0
    %v909 = vadd.f32 %v524, %v908
    %v910 = vpop.f32.mrb[0].mxu0
    %v911 = vadd.f32 %v524, %v910
    %v912 = vpop.f32.mrb[0].mxu0
    %v913 = vadd.f32 %v529, %v912
    %v914 = vpop.f32.mrb[0].mxu0
    %v915 = vadd.f32 %v529, %v914
    %916 = vmatprep.mubr.bf16.mxu0 %v802
    %917 = vmatmul.mubr.bf16.gmra.mrb[0].mxu0 %v747
    %v918 = vpop.f32.mrb[0].mxu0
    %v919 = vadd.f32 %v534, %v918
    %v920 = vpop.f32.mrb[0].mxu0
    %v921 = vadd.f32 %v534, %v920
    %v922 = vpop.f32.mrb[0].mxu0
    %v923 = vadd.f32 %v539, %v922
    %v924 = vpop.f32.mrb[0].mxu0
    %v925 = vadd.f32 %v539, %v924
    %926 = vmatprep.mubr.bf16.mxu0 %v805
    %927 = vmatmul.mubr.bf16.gmra.mrb[0].mxu0 %v749
    %v928 = vpop.f32.mrb[0].mxu0
    %v929 = vadd.f32 %v544, %v928
    %v930 = vpop.f32.mrb[0].mxu0
    %v931 = vadd.f32 %v544, %v930
    %v932 = vpop.f32.mrb[0].mxu0
    %v933 = vadd.f32 %v549, %v932
    %v934 = vpop.f32.mrb[0].mxu0
    %v935 = vadd.f32 %v549, %v934
    %936 = vmatprep.mubr.bf16.mxu0 %v808
    %937 = vmatmul.mubr.bf16.gmra.mrb[0].mxu0 %v751
    %v938 = vpop.f32.mrb[0].mxu0
    %v939 = vadd.f32 %v554, %v938
    %v940 = vpop.f32.mrb[0].mxu0
    %v941 = vadd.f32 %v554, %v940
    %v942 = vpop.f32.mrb[0].mxu0
    %v943 = vadd.f32 %v559, %v942
    %v944 = vpop.f32.mrb[0].mxu0
    %v945 = vadd.f32 %v559, %v944
    %946 = vmatprep.mubr.bf16.mxu0 %v811
    %947 = vmatmul.mubr.bf16.gmra.mrb[0].mxu0 %v753
    %v948 = vpop.f32.mrb[0].mxu0
    %v949 = vadd.f32 %v564, %v948
    %v950 = vpop.f32.mrb[0].mxu0
    %v951 = vadd.f32 %v564, %v950
    %v952 = vpop.f32.mrb[0].mxu0
    %v953 = vadd.f32 %v569, %v952
    %v954 = vpop.f32.mrb[0].mxu0
    %v955 = vadd.f32 %v569, %v954
    %956 = vmatprep.mubr.bf16.mxu0 %v814
    %957 = vmatmul.mubr.bf16.gmra.mrb[0].mxu0 %v755
    %v958 = vpop.f32.mrb[0].mxu0
    %v959 = vadd.f32 %v574, %v958
    %v960 = vpop.f32.mrb[0].mxu0
    %v961 = vadd.f32 %v574, %v960
    %v962 = vpop.f32.mrb[0].mxu0
    %v963 = vadd.f32 %v579, %v962
    %v964 = vpop.f32.mrb[0].mxu0
    %v965 = vadd.f32 %v579, %v964
    %966 = vmatprep.mubr.bf16.mxu0 %v817
    %967 = vmatmul.mubr.bf16.gmra.mrb[0].mxu0 %v757
    %v968 = vpop.f32.mrb[0].mxu0
    %v969 = vadd.f32 %v584, %v968
    %v970 = vpop.f32.mrb[0].mxu0
    %v971 = vadd.f32 %v584, %v970
    %v972 = vpop.f32.mrb[0].mxu0
    %v973 = vadd.f32 %v589, %v972
    %v974 = vpop.f32.mrb[0].mxu0
    %v975 = vadd.f32 %v589, %v974
    %976 = vmatprep.mubr.bf16.mxu0 %v820
    %977 = vmatmul.mubr.bf16.gmra.mrb[0].mxu0 %v759
    %v978 = vpop.f32.mrb[0].mxu0
    %v979 = vadd.f32 %v594, %v978
    %v980 = vpop.f32.mrb[0].mxu0
    %v981 = vadd.f32 %v594, %v980
    %v982 = vpop.f32.mrb[0].mxu0
    %v983 = vadd.f32 %v599, %v982
    %v984 = vpop.f32.mrb[0].mxu0
    %v985 = vadd.f32 %v599, %v984
    %986 = vmatprep.mubr.bf16.mxu0 %v823
    %987 = vmatmul.mubr.bf16.gmra.mrb[0].mxu0 %v761
    %v988 = vpop.f32.mrb[0].mxu0
    %v989 = vadd.f32 %v604, %v988
    %v990 = vpop.f32.mrb[0].mxu0
    %v991 = vadd.f32 %v604, %v990
    %v992 = vpop.f32.mrb[0].mxu0
    %v993 = vadd.f32 %v609, %v992
    %v994 = vpop.f32.mrb[0].mxu0
    %v995 = vadd.f32 %v609, %v994
    %996 = vmatprep.mubr.bf16.mxu0 %v826
    %997 = vmatmul.mubr.bf16.gmra.mrb[0].mxu0 %v763
    %v998 = vpop.f32.mrb[0].mxu0
    %v999 = vadd.f32 %v614, %v998
    %v1000 = vpop.f32.mrb[0].mxu0
    %v1001 = vadd.f32 %v614, %v1000
    %v1002 = vpop.f32.mrb[0].mxu0
    %v1003 = vadd.f32 %v619, %v1002
    %v1004 = vpop.f32.mrb[0].mxu0
    %v1005 = vadd.f32 %v619, %v1004
    %1006 = vmatprep.mubr.bf16.mxu0 %v829
    %1007 = vmatmul.mubr.bf16.gmra.mrb[0].mxu0 %v765
    %v1008 = vpop.f32.mrb[0].mxu0
    %v1009 = vadd.f32 %v624, %v1008
    %v1010 = vpop.f32.mrb[0].mxu0
    %v1011 = vadd.f32 %v624, %v1010
    %v1012 = vpop.f32.mrb[0].mxu0
    %v1013 = vadd.f32 %v629, %v1012
    %v1014 = vpop.f32.mrb[0].mxu0
    %v1015 = vadd.f32 %v629, %v1014
    %1016 = vmatprep.mubr.bf16.mxu0 %v832
    %1017 = vmatmul.mubr.bf16.gmra.mrb[0].mxu0 %v767
    %v1018 = vpop.f32.mrb[0].mxu0
    %v1019 = vadd.f32 %v634, %v1018
    %v1020 = vpop.f32.mrb[0].mxu0
    %v1021 = vadd.f32 %v634, %v1020
    %v1022 = vpop.f32.mrb[0].mxu0
    %v1023 = vadd.f32 %v639, %v1022
    %v1024 = vpop.f32.mrb[0].mxu0
    %v1025 = vadd.f32 %v639, %v1024
    %1026 = vdwg.mxu0
    %v1027 = vmax.f32 %v869, 0.0
    %v1028 = vmax.f32 %v871, 0.0
    %v1029 = vmax.f32 %v873, 0.0
    %v1030 = vmax.f32 %v875, 0.0
    %v1031 = vmax.f32 %v879, 0.0
    %v1032 = vmax.f32 %v881, 0.0
    %v1033 = vmax.f32 %v883, 0.0
    %v1034 = vmax.f32 %v885, 0.0
    %v1035 = vmax.f32 %v889, 0.0
    %v1036 = vmax.f32 %v891, 0.0
    %v1037 = vmax.f32 %v893, 0.0
    %v1038 = vmax.f32 %v895, 0.0
    %v1039 = vmax.f32 %v899, 0.0
    %v1040 = vmax.f32 %v901, 0.0
    %v1041 = vmax.f32 %v903, 0.0
    %v1042 = vmax.f32 %v905, 0.0
    %v1043 = vmax.f32 %v909, 0.0
    %v1044 = vmax.f32 %v911, 0.0
    %v1045 = vmax.f32 %v913, 0.0
    %v1046 = vmax.f32 %v915, 0.0
    %v1047 = vmax.f32 %v919, 0.0
    %v1048 = vmax.f32 %v921, 0.0
    %v1049 = vmax.f32 %v923, 0.0
    %v1050 = vmax.f32 %v925, 0.0
    %v1051 = vmax.f32 %v929, 0.0
    %v1052 = vmax.f32 %v931, 0.0
    %v1053 = vmax.f32 %v933, 0.0
    %v1054 = vmax.f32 %v935, 0.0
    %v1055 = vmax.f32 %v939, 0.0
    %v1056 = vmax.f32 %v941, 0.0
    %v1057 = vmax.f32 %v943, 0.0
    %v1058 = vmax.f32 %v945, 0.0
    %v1059 = vmax.f32 %v949, 0.0
    %v1060 = vmax.f32 %v951, 0.0
    %v1061 = vmax.f32 %v953, 0.0
    %v1062 = vmax.f32 %v955, 0.0
    %v1063 = vmax.f32 %v959, 0.0
    %v1064 = vmax.f32 %v961, 0.0
    %v1065 = vmax.f32 %v963, 0.0
    %v1066 = vmax.f32 %v965, 0.0
    %v1067 = vmax.f32 %v969, 0.0
    %v1068 = vmax.f32 %v971, 0.0
    %v1069 = vmax.f32 %v973, 0.0
    %v1070 = vmax.f32 %v975, 0.0
    %v1071 = vmax.f32 %v979, 0.0
    %v1072 = vmax.f32 %v981, 0.0
    %v1073 = vmax.f32 %v983, 0.0
    %v1074 = vmax.f32 %v985, 0.0
    %v1075 = vmax.f32 %v989, 0.0
    %v1076 = vmax.f32 %v991, 0.0
    %v1077 = vmax.f32 %v993, 0.0
    %v1078 = vmax.f32 %v995, 0.0
    %v1079 = vmax.f32 %v999, 0.0
    %v1080 = vmax.f32 %v1001, 0.0
    %v1081 = vmax.f32 %v1003, 0.0
    %v1082 = vmax.f32 %v1005, 0.0
    %v1083 = vmax.f32 %v1009, 0.0
    %v1084 = vmax.f32 %v1011, 0.0
    %v1085 = vmax.f32 %v1013, 0.0
    %v1086 = vmax.f32 %v1015, 0.0
    %v1087 = vmax.f32 %v1019, 0.0
    %v1088 = vmax.f32 %v1021, 0.0
    %v1089 = vmax.f32 %v1023, 0.0
    %v1090 = vmax.f32 %v1025, 0.0
    %v1091 = vpack.c.bf16 %v1029, %v1027
    %v1092 = vpack.c.bf16 %v1030, %v1028
    %v1093 = vpack.c.bf16 %v1033, %v1031
    %v1094 = vpack.c.bf16 %v1034, %v1032
    %v1095 = vpack.c.bf16 %v1037, %v1035
    %v1096 = vpack.c.bf16 %v1038, %v1036
    %v1097 = vpack.c.bf16 %v1041, %v1039
    %v1098 = vpack.c.bf16 %v1042, %v1040
    %v1099 = vpack.c.bf16 %v1045, %v1043
    %v1100 = vpack.c.bf16 %v1046, %v1044
    %v1101 = vpack.c.bf16 %v1049, %v1047
    %v1102 = vpack.c.bf16 %v1050, %v1048
    %v1103 = vpack.c.bf16 %v1053, %v1051
    %v1104 = vpack.c.bf16 %v1054, %v1052
    %v1105 = vpack.c.bf16 %v1057, %v1055
    %v1106 = vpack.c.bf16 %v1058, %v1056
    %v1107 = vpack.c.bf16 %v1061, %v1059
    %v1108 = vpack.c.bf16 %v1062, %v1060
    %v1109 = vpack.c.bf16 %v1065, %v1063
    %v1110 = vpack.c.bf16 %v1066, %v1064
    %v1111 = vpack.c.bf16 %v1069, %v1067
    %v1112 = vpack.c.bf16 %v1070, %v1068
    %v1113 = vpack.c.bf16 %v1073, %v1071
    %v1114 = vpack.c.bf16 %v1074, %v1072
    %v1115 = vpack.c.bf16 %v1077, %v1075
    %v1116 = vpack.c.bf16 %v1078, %v1076
    %v1117 = vpack.c.bf16 %v1081, %v1079
    %v1118 = vpack.c.bf16 %v1082, %v1080
    %v1119 = vpack.c.bf16 %v1085, %v1083
    %v1120 = vpack.c.bf16 %v1086, %v1084
    %v1121 = vpack.c.bf16 %v1089, %v1087
    %v1122 = vpack.c.bf16 %v1090, %v1088
    %v1123 = vld [vmem:[%s5] sm:$0xff]
    %v1124 = vld [vmem:[%s5 + $0x8] sm:$0x33]
    %v1125 = vld [vmem:[%s6] sm:$0xff]
    %v1126 = vld [vmem:[%s6 + $0x8] sm:$0xf]
    %1128 = vset.pattern.permute.xlu0 0
    %1129 = vperm.xlu0 %1128, %v1125
    %v1130 = vpop.permute.xlu0 %1129
    %1133 = vset.pattern.permute.xlu0 0
    %1134 = vperm.xlu0 %1133, %v1126
    %v1135 = vpop.permute.xlu0 %1134
    %v1139 = vunpack.c.l.b16 %v1123
    %v1140 = vunpack.c.h.b16 %v1123
    %v1141 = vunpack.c.l.b16 %v1124
    %v1142 = vunpack.c.h.b16 %v1124
    %v1143 = vpack.c.b16 %v1141, %v1139
    %v1144 = vpack.c.b16 %v1142, %v1140
    %1147 = vmatprep.subr.bf16.mxu0 %v1092
    %1148 = vmatpush1.bf16.msra.mxu0 %v1091
    %1149 = vmatprep.subr.bf16.mxu0 %v1094
    %1150 = vmatpush1.bf16.msra.mxu0 %v1093
    %1151 = vmatprep.subr.bf16.mxu0 %v1096
    %1152 = vmatpush1.bf16.msra.mxu0 %v1095
    %1153 = vmatprep.subr.bf16.mxu0 %v1098
    %1154 = vmatpush1.bf16.msra.mxu0 %v1097
    %1155 = vmatprep.subr.bf16.mxu0 %v1100
    %1156 = vmatpush1.bf16.msra.mxu0 %v1099
    %1157 = vmatprep.subr.bf16.mxu0 %v1102
    %1158 = vmatpush1.bf16.msra.mxu0 %v1101
    %1159 = vmatprep.subr.bf16.mxu0 %v1104
    %1160 = vmatpush1.bf16.msra.mxu0 %v1103
    %1161 = vmatprep.subr.bf16.mxu0 %v1106
    %1162 = vmatpush1.bf16.msra.mxu0 %v1105
    %1163 = vmatprep.subr.bf16.mxu0 %v1108
    %1164 = vmatpush1.bf16.msra.mxu0 %v1107
    %1165 = vmatprep.subr.bf16.mxu0 %v1110
    %1166 = vmatpush1.bf16.msra.mxu0 %v1109
    %1167 = vmatprep.subr.bf16.mxu0 %v1112
    %1168 = vmatpush1.bf16.msra.mxu0 %v1111
    %1169 = vmatprep.subr.bf16.mxu0 %v1114
    %1170 = vmatpush1.bf16.msra.mxu0 %v1113
    %1171 = vmatprep.subr.bf16.mxu0 %v1116
    %1172 = vmatpush1.bf16.msra.mxu0 %v1115
    %1173 = vmatprep.subr.bf16.mxu0 %v1118
    %1174 = vmatpush1.bf16.msra.mxu0 %v1117
    %1175 = vmatprep.subr.bf16.mxu0 %v1120
    %1176 = vmatpush1.bf16.msra.mxu0 %v1119
    %1177 = vmatprep.subr.bf16.mxu0 %v1122
    %1178 = vmatpush1.bf16.msra.mxu0 %v1121
    %1179 = vmatprep.mubr.bf16.mxu0 %v1144
    %1180 = vmatmul.mubr.bf16.gmra.mrb[0].mxu0 %v1143
    %v1181 = vpop.f32.mrb[0].mxu0
    %v1182 = vadd.f32 %v1130, %v1181
    %v1183 = vpop.f32.mrb[0].mxu0
    %v1184 = vadd.f32 %v1130, %v1183
    %v1185 = vpop.f32.mrb[0].mxu0
    %v1186 = vadd.f32 %v1135, %v1185
    %v1187 = vpop.f32.mrb[0].mxu0
    %v1188 = vadd.f32 %v1135, %v1187
    %1189 = vdwg.mxu0
    %vm1190 = vcmask 1043456
    %v1191 = vsel %vm1190, %v1186, -inf
    %v1192 = vmax.f32 %v1182, %v1191
    %v1193 = vrot.slane %v1192, 4
    %v1194 = vmax.f32 %v1192, %v1193
    %v1195 = vrot.slane %v1194, 2
    %v1196 = vmax.f32 %v1194, %v1195
    %v1197 = vrot.slane %v1196, 1
    %v1198 = vmax.f32 %v1196, %v1197
    %v1199 = vsel %vm1190, %v1188, -inf
    %v1200 = vmax.f32 %v1184, %v1199
    %v1201 = vrot.slane %v1200, 4
    %v1202 = vmax.f32 %v1200, %v1201
    %v1203 = vrot.slane %v1202, 2
    %v1204 = vmax.f32 %v1202, %v1203
    %v1205 = vrot.slane %v1204, 1
    %v1206 = vmax.f32 %v1204, %v1205
    %v1207 = vsub.f32 %v1182, %v1198
    %v1208 = vsub.f32 %v1184, %v1206
    %v1209 = vsub.f32 %v1186, %v1198
    %v1210 = vsub.f32 %v1188, %v1206
    %v1211 = vmul.f32 %v1207, 1.442695
    %v1212 = vpow.pop %v1211
    %v1213 = vmul.f32 %v1208, 1.442695
    %v1214 = vpow.pop %v1213
    %v1215 = vmul.f32 %v1209, 1.442695
    %v1216 = vpow.pop %v1215
    %v1217 = vmul.f32 %v1210, 1.442695
    %v1218 = vpow.pop %v1217
    %v1219 = vsel %vm1190, %v1216, 0.0
    %v1220 = vadd.f32 %v1212, %v1219
    %v1221 = vrot.slane %v1220, 4
    %v1222 = vadd.f32 %v1220, %v1221
    %v1223 = vrot.slane %v1222, 2
    %v1224 = vadd.f32 %v1222, %v1223
    %v1225 = vrot.slane %v1224, 1
    %v1226 = vadd.f32 %v1224, %v1225
    %v1227 = vsel %vm1190, %v1218, 0.0
    %v1228 = vadd.f32 %v1214, %v1227
    %v1229 = vrot.slane %v1228, 4
    %v1230 = vadd.f32 %v1228, %v1229
    %v1231 = vrot.slane %v1230, 2
    %v1232 = vadd.f32 %v1230, %v1231
    %v1233 = vrot.slane %v1232, 1
    %v1234 = vadd.f32 %v1232, %v1233
    %v1235 = vrcp.pop %v1226
    %v1236 = vmul.f32 %v1212, %v1235
    %v1237 = vrcp.pop %v1234
    %v1238 = vmul.f32 %v1214, %v1237
    %v1239 = vmul.f32 %v1216, %v1235
    %v1240 = vmul.f32 %v1218, %v1237
    %1241 = vst [vmem:[#allocation2] sm:$0xff] %v1236
    %1242 = vst [vmem:[#allocation2 + $0x8] sm:$0xff] %v1238
    %1243 = vst [vmem:[#allocation2 + $0x10] sm:$0xf] %v1239
    %1244 = vst [vmem:[#allocation2 + $0x18] sm:$0xf] %v1240
    // Predicated region
    $region30: #{tpu_custom_call.1} parent=1 // pred_check
      _
    $region31: #{tpu_custom_call.1} parent=1 // pred_check_branch
      %1246 = sbr.rel (0) target = $region33
    $region32: #{tpu_custom_call.1} parent=1 // pred_region
      %s1248 = ssub.s32 512, 512
      %1249 = vsyncadd [#allocation3], %s1248
      %s1250 = sshll.u32 [#allocation2], 4
      %s1251 = int_to_ptr.vmem [resolvable:$true] %s1250
      %1256 = dma.vmem_to_hbm [thread:$0]  %s1251, 512, %s7, [#allocation3], 256, 256, 16
    $region33: #{tpu_custom_call.1} parent=1 // pred_fallthru
      _
    // Predicated region
    $region34: #{tpu_custom_call.1} parent=1 // pred_check
      _
    $region35: #{tpu_custom_call.1} parent=1 // pred_check_branch
      %1258 = sbr.rel (0) target = $region37
    $region36: #{tpu_custom_call.1} parent=1 // pred_region
      %1259 = dma.done [#allocation3], 512
    $region37: #{tpu_custom_call.1} parent=1 // pred_fallthru
      _
    %1260 = vsyncpa [#allocation3], 1

</llo_original>
